<compile_context>
chip_gen: v7x
topology: tpu7x:2x2x1
jax: 0.10.0
libtpu: 0.0.40
codegen_flags: <defaults>
</compile_context>

<pallas_src>
import jax
import jax.numpy as jnp
from jax.experimental import pallas as pl
from jax.experimental.pallas import tpu as pltpu


def _affine_sigmoid_kernel(w_ref, b_ref, x_ref, o_ref):
    # w_ref, b_ref: (1,) f32 scalars in SMEM (weight / bias of Linear(1, 1)).
    # x_ref, o_ref: (block_rows, lanes) lane-dense tiles in VMEM.
    w = w_ref[0]
    b = b_ref[0]
    z = x_ref[...].astype(jnp.float32) * w + b     # VPU
    o_ref[...] = jax.nn.sigmoid(z).astype(o_ref.dtype)  # EUP (exp/recip)


def _round_up(a, m):
    return ((a + m - 1) // m) * m


# Largest-first so the common case hits the no-pad / no-slice fast path with
# the widest lane-dense tile.
_LANE_CANDIDATES = (512, 256, 128)


def linear_sigmoid(x, weight, bias, *, lanes=None, max_block_rows=1024,
                   use_pallas=None, min_pallas_elems=262_144):
    """sigmoid(x @ weight.T + bias) for a Linear(1, 1).

    x: (..., 1) float array; weight: (1, 1); bias: (1,).
    Returns an array with the same shape and dtype as x.
    """
    # Elementwise formulation is valid ONLY because in == out == 1.
    assert weight.shape == (1, 1), weight.shape
    assert bias.shape == (1,), bias.shape
    assert x.shape[-1] == 1, x.shape

    orig_shape = x.shape
    out_dtype = x.dtype
    n = x.size

    w = weight.reshape(()).astype(jnp.float32)
    b = bias.reshape(()).astype(jnp.float32)

    # --- Small-input fallback: fused XLA elementwise beats any launch. -------
    if use_pallas is None:
        use_pallas = n >= min_pallas_elems
    if (not use_pallas) or n == 0:
        z = x.astype(jnp.float32) * w + b
        return jax.nn.sigmoid(z).astype(out_dtype)

    # --- Lane width: prefer a divisor of n (no pad, no output slice). --------
    if lanes is None:
        lanes = _LANE_CANDIDATES[0]
        for cand in _LANE_CANDIDATES:
            if n % cand == 0:
                lanes = cand
                break
    assert lanes % 128 == 0

    flat = x.reshape(-1)                     # metadata-only (last dim is 1)
    rows = pl.cdiv(n, lanes)
    padded_n = rows * lanes
    needs_pad = padded_n != n
    if needs_pad:
        # Only up to (lanes - 1) extra elements; still one HBM pass, which is
        # why the divisible fast path above is preferred.
        flat = jnp.pad(flat, (0, padded_n - n))
    x2d = flat.reshape(rows, lanes)

    # --- Block sizing: sublane multiple depends on dtype packing. ------------
    itemsize = jnp.dtype(out_dtype).itemsize
    sublane = max(8, 32 // max(itemsize, 1))     # f32->8, bf16->16, int8->32
    block_rows = min(_round_up(max_block_rows, sublane),
                     _round_up(rows, sublane))
    grid = (pl.cdiv(rows, block_rows),)          # ragged last block is clipped

    w_smem = w.reshape(1)
    b_smem = b.reshape(1)

    out2d = pl.pallas_call(
        _affine_sigmoid_kernel,
        out_shape=jax.ShapeDtypeStruct((rows, lanes), out_dtype),
        grid=grid,
        in_specs=[
            pl.BlockSpec(memory_space=pltpu.MemorySpace.SMEM),   # weight
            pl.BlockSpec(memory_space=pltpu.MemorySpace.SMEM),   # bias
            pl.BlockSpec((block_rows, lanes), lambda i: (i, 0)),  # x tile
        ],
        out_specs=pl.BlockSpec((block_rows, lanes), lambda i: (i, 0)),
        # Alias only when x2d is a genuine intermediate (pad path); on the
        # fast path x2d aliases the caller's input buffer and the alias would
        # force XLA to insert a copy.
        input_output_aliases={2: 0} if needs_pad else {},
        cost_estimate=pl.CostEstimate(
            flops=2 * rows * lanes,
            transcendentals=rows * lanes,
            bytes_accessed=2 * rows * lanes * itemsize,
        ),
        compiler_params=pltpu.CompilerParams(
            dimension_semantics=("parallel",),
        ),
    )(w_smem, b_smem, x2d)

    if needs_pad:
        # Slice away the tail padding (only taken on the non-divisible path).
        return out2d.reshape(-1)[:n].reshape(orig_shape)
    return out2d.reshape(orig_shape)             # metadata-only


if __name__ == "__main__":
    key = jax.random.PRNGKey(0)
    kx1, kx2, kx3, kw, kb = jax.random.split(key, 5)

    # Deterministic "parameters" for Linear(1, 1).
    weight = jax.random.uniform(kw, (1, 1), jnp.float32, minval=-1.0, maxval=1.0)
    bias = jax.random.uniform(kb, (1,), jnp.float32, minval=-1.0, maxval=1.0)

    def ref(x):
        return jax.nn.sigmoid(x @ weight.T + bias)

    # Jit the wrapper so pad/reshape/slice compile together with pallas_call
    # and the pad-path alias is genuinely free.
    fwd = jax.jit(linear_sigmoid,
                  static_argnames=("lanes", "max_block_rows",
                                   "use_pallas", "min_pallas_elems"))

    # Case 1: tiny (8, 1) batch (matches the module's toy usage). Forced
    # through the Pallas path to exercise the kernel (normally it would take
    # the fused-XLA fallback).
    x1 = jax.random.normal(kx1, (8, 1), jnp.float32)
    y1 = jax.block_until_ready(fwd(x1, weight, bias, use_pallas=True))
    assert y1.shape == x1.shape and y1.dtype == x1.dtype
    assert jnp.allclose(y1, ref(x1), atol=1e-6)

    # Case 2: (5000, 1) — n not divisible by 128: pad path + ragged block.
    x2 = jax.random.normal(kx2, (5000, 1), jnp.float32)
    y2 = jax.block_until_ready(fwd(x2, weight, bias, use_pallas=True))
    assert y2.shape == x2.shape
    assert jnp.allclose(y2, ref(x2), atol=1e-6)

    # Case 3: (532480, 1) — above the auto-threshold; divisible fast path
    # (no pad, no output slice), 2-step grid with a clipped last block.
    x3 = jax.random.normal(kx3, (532480, 1), jnp.float32)
    y3 = jax.block_until_ready(fwd(x3, weight, bias))
    assert y3.shape == x3.shape
    assert jnp.allclose(y3, ref(x3), atol=1e-6)

    print("KERNEL_OK")
</pallas_src>

<mosaic_0001>
module attributes {stable_mosaic.version = 11 : i64} {
  func.func @_affine_sigmoid_kernel(%arg0: i32, %arg1: memref<1xf32, #tpu.memory_space<smem>>, %arg2: memref<1xf32, #tpu.memory_space<smem>>, %arg3: memref<8x512xf32, #tpu.memory_space<vmem>>, %arg4: memref<8x512xf32, #tpu.memory_space<vmem>>) attributes {dimension_semantics = [#tpu.dimension_semantics<parallel>], iteration_bounds = array<i64: 1>, scalar_prefetch = 0 : i64, scratch_operands = 0 : i64, tpu.core_type = #tpu.core_type<tc>, window_params = [{transform_indices = @transform_0, window_bounds = array<i64: 1>}, {transform_indices = @transform_1, window_bounds = array<i64: 1>}, {transform_indices = @transform_2, window_bounds = array<i64: 8, 512>}, {transform_indices = @transform_3, window_bounds = array<i64: 8, 512>}]} {
    %c0 = arith.constant 0 : index
    %0 = memref.load %arg1[%c0] : memref<1xf32, #tpu.memory_space<smem>>
    %c0_0 = arith.constant 0 : index
    %1 = memref.load %arg2[%c0_0] : memref<1xf32, #tpu.memory_space<smem>>
    %c0_1 = arith.constant 0 : index
    %c0_2 = arith.constant 0 : index
    %2 = vector.load %arg3[%c0_1, %c0_2] : memref<8x512xf32, #tpu.memory_space<vmem>>, vector<8x512xf32>
    %3 = vector.broadcast %0 : f32 to vector<8x512xf32>
    %4 = arith.mulf %2, %3 : vector<8x512xf32>
    %5 = vector.broadcast %1 : f32 to vector<8x512xf32>
    %6 = arith.addf %4, %5 : vector<8x512xf32>
    %7 = arith.negf %6 : vector<8x512xf32>
    %8 = math.exp %7 : vector<8x512xf32>
    %cst = arith.constant 1.000000e+00 : f32
    %9 = vector.broadcast %cst : f32 to vector<8x512xf32>
    %10 = arith.addf %9, %8 : vector<8x512xf32>
    %11 = arith.divf %9, %10 : vector<8x512xf32>
    %c0_3 = arith.constant 0 : index
    %c0_4 = arith.constant 0 : index
    %12 = vector.load %arg4[%c0_3, %c0_4] : memref<8x512xf32, #tpu.memory_space<vmem>>, vector<8x512xf32>
    tpu.vector_store %arg4[%c0_3, %c0_4], %11 {strides = array<i32>} : memref<8x512xf32, #tpu.memory_space<vmem>>, vector<8x512xf32>,
    return
  }
  func.func @transform_0(%arg0: i32) -> i32 {
    %c0_i32 = arith.constant 0 : i32
    %c0_i32_0 = arith.constant 0 : i32
    return %c0_i32 : i32
  }
  func.func @transform_1(%arg0: i32) -> i32 {
    %c0_i32 = arith.constant 0 : i32
    %c0_i32_0 = arith.constant 0 : i32
    return %c0_i32 : i32
  }
  func.func @transform_2(%arg0: i32) -> (i32, i32) {
    %c0_i32 = arith.constant 0 : i32
    %c0_i32_0 = arith.constant 0 : i32
    return %arg0, %c0_i32 : i32, i32
  }
  func.func @transform_3(%arg0: i32) -> (i32, i32) {
    %c0_i32 = arith.constant 0 : i32
    %c0_i32_0 = arith.constant 0 : i32
    return %arg0, %c0_i32 : i32, i32
  }
}

</mosaic_0001>

<llo_original>
// kernel: linear_sigmoid.1
$region0: #{linear_sigmoid.1}
  #allocation0 [shape = 'u32[]', space=smem, size = 0x4, offset = 0x4, fixed_abs, tag = 'smem constant byte address 0x4 - core index']
  #allocation1 [shape = 'u32[144,128]{1,0:T(1,128)}', space=vmem, size = 0x12000, scoped, tag = 'internal scratch']
  #allocation2 [shape = 'f32[1]{0:T(128)S(6)}', space=smem, size = 0x200, scoped, tag = 'scoped memory for linear_sigmoid.1']
  #allocation3 [shape = 'f32[1]{0:T(128)S(6)}', space=smem, size = 0x200, scoped, tag = 'scoped memory for linear_sigmoid.1']
  %s0 = inlined_call_operand.<no memory space> [shape: f32[1], index: 0, kind: input, shape index: {}]
  %s1 = inlined_call_operand.<no memory space> [shape: f32[1], index: 1, kind: input, shape index: {}]
  %s2 = inlined_call_operand.vmem [shape: f32[1,512], index: 2, kind: input, shape index: {}, may-alias: {2,3}]
  %s3 = inlined_call_operand.vmem [shape: f32[1,512], index: 3, kind: output, shape index: {}, may-alias: {2,3}]
  %s4 = sld [smem:[#allocation0]]
  $region52: #{linear_sigmoid.1} parent=0
    _
  %s6 = ssub.s32 1, %s4
  %s7 = scalar_select 0, %s6, %s4
  %8 = sst [smem:[#allocation2]] %s0
  %9 = sst [smem:[#allocation3]] %s1
  $region1: #{linear_sigmoid.1} parent=0
    #allocation4 [shape = 'u8[16384]{0}', space=vmem, size = 0x4000, scoped, tag = 'output window, operand 0, single buffered']
    // Predicated region
    $region2: #{linear_sigmoid.1} parent=1 // pred_check
      _
    $region3: #{linear_sigmoid.1} parent=1 // pred_check_branch
      %11 = sbr.rel (0) target = $region5
    $region4: #{linear_sigmoid.1} parent=1 // pred_region
      _
    $region5: #{linear_sigmoid.1} parent=1 // pred_fallthru
      _
    // Predicated region
    $region6: #{linear_sigmoid.1} parent=1 // pred_check
      _
    $region7: #{linear_sigmoid.1} parent=1 // pred_check_branch
      %13 = sbr.rel (0) target = $region9
    $region8: #{linear_sigmoid.1} parent=1 // pred_region
      _
    $region9: #{linear_sigmoid.1} parent=1 // pred_fallthru
      _
    // Predicated region
    $region10: #{linear_sigmoid.1} parent=1 // pred_check
      _
    $region11: #{linear_sigmoid.1} parent=1 // pred_check_branch
      %15 = sbr.rel (0) target = $region13
    $region12: #{linear_sigmoid.1} parent=1 // pred_region
      _
    $region13: #{linear_sigmoid.1} parent=1 // pred_fallthru
      _
    %s16 = sld [smem:[#allocation2]]
    %s17 = sld [smem:[#allocation3]]
    %v18 = vld [vmem:[%s2] sm:$0xf]
    %v19 = vld [vmem:[%s2 + $0x4] sm:$0xf]
    %v20 = vld [vmem:[%s2 + $0x8] sm:$0xf]
    %v21 = vld [vmem:[%s2 + $0xc] sm:$0xf]
    %v22 = vld [vmem:[%s2 + $0x10] sm:$0xf]
    %v23 = vld [vmem:[%s2 + $0x14] sm:$0xf]
    %v24 = vld [vmem:[%s2 + $0x18] sm:$0xf]
    %v25 = vld [vmem:[%s2 + $0x1c] sm:$0xf]
    %v26 = vstv %s16
    %v27 = vmul.f32 %v18, %v26
    %v28 = vmul.f32 %v19, %v26
    %v29 = vmul.f32 %v20, %v26
    %v30 = vmul.f32 %v21, %v26
    %v31 = vmul.f32 %v22, %v26
    %v32 = vmul.f32 %v23, %v26
    %v33 = vmul.f32 %v24, %v26
    %v34 = vmul.f32 %v25, %v26
    %v35 = vstv %s17
    %v36 = vadd.f32 %v27, %v35
    %v37 = vadd.f32 %v28, %v35
    %v38 = vadd.f32 %v29, %v35
    %v39 = vadd.f32 %v30, %v35
    %v40 = vadd.f32 %v31, %v35
    %v41 = vadd.f32 %v32, %v35
    %v42 = vadd.f32 %v33, %v35
    %v43 = vadd.f32 %v34, %v35
    %v44 = vxor.u32 %v36, 2147483648
    %v45 = vxor.u32 %v37, 2147483648
    %v46 = vxor.u32 %v38, 2147483648
    %v47 = vxor.u32 %v39, 2147483648
    %v48 = vxor.u32 %v40, 2147483648
    %v49 = vxor.u32 %v41, 2147483648
    %v50 = vxor.u32 %v42, 2147483648
    %v51 = vxor.u32 %v43, 2147483648
    %v52 = vmul.f32 %v44, 1.442695
    %v53 = vpow.pop %v52
    %v54 = vmul.f32 %v45, 1.442695
    %v55 = vpow.pop %v54
    %v56 = vmul.f32 %v46, 1.442695
    %v57 = vpow.pop %v56
    %v58 = vmul.f32 %v47, 1.442695
    %v59 = vpow.pop %v58
    %v60 = vmul.f32 %v48, 1.442695
    %v61 = vpow.pop %v60
    %v62 = vmul.f32 %v49, 1.442695
    %v63 = vpow.pop %v62
    %v64 = vmul.f32 %v50, 1.442695
    %v65 = vpow.pop %v64
    %v66 = vmul.f32 %v51, 1.442695
    %v67 = vpow.pop %v66
    %v68 = vadd.f32 %v53, 1.0
    %v69 = vadd.f32 %v55, 1.0
    %v70 = vadd.f32 %v57, 1.0
    %v71 = vadd.f32 %v59, 1.0
    %v72 = vadd.f32 %v61, 1.0
    %v73 = vadd.f32 %v63, 1.0
    %v74 = vadd.f32 %v65, 1.0
    %v75 = vadd.f32 %v67, 1.0
    %v76 = vrcp.pop %v68
    %v77 = vmul.f32 1.0, %v76
    %v78 = vrcp.pop %v69
    %v79 = vmul.f32 1.0, %v78
    %v80 = vrcp.pop %v70
    %v81 = vmul.f32 1.0, %v80
    %v82 = vrcp.pop %v71
    %v83 = vmul.f32 1.0, %v82
    %v84 = vrcp.pop %v72
    %v85 = vmul.f32 1.0, %v84
    %v86 = vrcp.pop %v73
    %v87 = vmul.f32 1.0, %v86
    %v88 = vrcp.pop %v74
    %v89 = vmul.f32 1.0, %v88
    %v90 = vrcp.pop %v75
    %v91 = vmul.f32 1.0, %v90
    %v92 = vlaneseq
    %vm93 = vcmp.ge.s32.totalorder %v92, 0
    %vm94 = vcmp.lt.s32.totalorder %v92, 512
    %vm95 = vmand %vm93, %vm94
    %96 = vst.msk [vmem:[#allocation4] sm:$0xf] %vm95, %v77
    %97 = vst.msk [vmem:[#allocation4 + $0x4] sm:$0xf] %vm95, %v79
    %98 = vst.msk [vmem:[#allocation4 + $0x8] sm:$0xf] %vm95, %v81
    %99 = vst.msk [vmem:[#allocation4 + $0xc] sm:$0xf] %vm95, %v83
    %100 = vst.msk [vmem:[#allocation4 + $0x10] sm:$0xf] %vm95, %v85
    %101 = vst.msk [vmem:[#allocation4 + $0x14] sm:$0xf] %vm95, %v87
    %102 = vst.msk [vmem:[#allocation4 + $0x18] sm:$0xf] %vm95, %v89
    %103 = vst.msk [vmem:[#allocation4 + $0x1c] sm:$0xf] %vm95, %v91
    // Predicated region
    $region14: #{linear_sigmoid.1} parent=1 // pred_check
      _
    $region15: #{linear_sigmoid.1} parent=1 // pred_check_branch
      %105 = sbr.rel (0) target = $region17
    $region16: #{linear_sigmoid.1} parent=1 // pred_region
      // Predicated region
      $region18: #{linear_sigmoid.1} parent=16 // pred_check
        _
      $region19: #{linear_sigmoid.1} parent=16 // pred_check_branch
        %107 = sbr.rel (0) target = $region21
      $region20: #{linear_sigmoid.1} parent=16 // pred_region
        // Predicated region
        $region22: #{linear_sigmoid.1} parent=20 // pred_check
          _
        $region23: #{linear_sigmoid.1} parent=20 // pred_check_branch
          %109 = sbr.rel target = $region25
        $region24: #{linear_sigmoid.1} parent=20 // pred_region
          // Predicated region
          $region37: #{linear_sigmoid.1} parent=24 // pred_check
            _
          $region38: #{linear_sigmoid.1} parent=24 // pred_check_branch
            %124 = sbr.rel (0) target = $region40
          $region39: #{linear_sigmoid.1} parent=24 // pred_region
            loop: start=0, step=1, limit=1
            $region41: #{linear_sigmoid.1} parent=39 // loop_pre_header
              _
            $region42: #{linear_sigmoid.1} parent=39 // loop_header
              %s127 = sphi 0, %s131
              %p128 = scmp.ge.s32.totalorder %s127, 1
              %s132 = sphi [#allocation4], [#allocation4]
              %s133 = sphi %s3, %s3
            $region43: #{linear_sigmoid.1} parent=39 // loop_header_branch
              %130 = sbr.rel (%p128) target = $region47
            $region44: #{linear_sigmoid.1} parent=39 // loop_body
              %v134 = vld [vmem:[%s132] sm:$0xf]
              %135 = vst [vmem:[%s133] sm:$0xf] %v134
            $region45: #{linear_sigmoid.1} parent=39 // loop_footer
              %s131 = sadd.s32 1, %s127
            $region46: #{linear_sigmoid.1} parent=39 // loop_footer_branch
              %126 = sbr.rel target = $region42
            $region47: #{linear_sigmoid.1} parent=39 // loop_exit
              _
          $region40: #{linear_sigmoid.1} parent=24 // pred_fallthru
            _
        $region25: #{linear_sigmoid.1} parent=20 // pred_fallthru
          _
        // Predicated region
        $region26: #{linear_sigmoid.1} parent=20 // pred_check
          _
        $region27: #{linear_sigmoid.1} parent=20 // pred_check_branch
          %111 = sbr.rel (0) target = $region29
        $region28: #{linear_sigmoid.1} parent=20 // pred_region
          loop: start=0, step=1, limit=1
          $region30: #{linear_sigmoid.1} parent=28 // loop_pre_header
            _
          $region31: #{linear_sigmoid.1} parent=28 // loop_header
            %s114 = sphi 0, %s118
            %p115 = scmp.ge.s32.totalorder %s114, 1
            %s119 = sphi [#allocation4], [#allocation4]
            %s120 = sphi %s3, %s3
          $region32: #{linear_sigmoid.1} parent=28 // loop_header_branch
            %117 = sbr.rel (%p115) target = $region36
          $region33: #{linear_sigmoid.1} parent=28 // loop_body
            %v121 = vld [vmem:[%s119] sm:$0xf]
            %122 = vst [vmem:[%s120] sm:$0xf] %v121
          $region34: #{linear_sigmoid.1} parent=28 // loop_footer
            %s118 = sadd.s32 1, %s114
          $region35: #{linear_sigmoid.1} parent=28 // loop_footer_branch
            %113 = sbr.rel target = $region31
          $region36: #{linear_sigmoid.1} parent=28 // loop_exit
            _
        $region29: #{linear_sigmoid.1} parent=20 // pred_fallthru
          _
      $region21: #{linear_sigmoid.1} parent=16 // pred_fallthru
        _
      %136 = vnop
    $region17: #{linear_sigmoid.1} parent=1 // pred_fallthru
      _
    // Predicated region
    $region48: #{linear_sigmoid.1} parent=1 // pred_check
      _
    $region49: #{linear_sigmoid.1} parent=1 // pred_check_branch
      %138 = sbr.rel (0) target = $region51
    $region50: #{linear_sigmoid.1} parent=1 // pred_region
      _
    $region51: #{linear_sigmoid.1} parent=1 // pred_fallthru
      _

</llo_original>
